<compile_context>
chip_gen: v6e
topology: v6e:2x2x1
jax: 0.10.0
libtpu: 0.0.40
codegen_flags: <defaults>
</compile_context>

<pallas_src>
import jax
import jax.numpy as jnp
from jax.experimental import pallas as pl
from jax.experimental.pallas import tpu as pltpu


def _attention_kernel(enc_ref, dec_ref, we_t_ref, be_ref, wd_t_ref, bd_ref,
                      wf_ref, bf_ref, ctx_ref, alpha_ref):
    # enc_ref  : (Bt, N, E)  encoder_out tile (compute dtype: f32 or bf16)
    # dec_ref  : (Bt, D)     decoder hidden tile
    # we_t_ref : (E, A)      encoder_att weight, pre-transposed
    # be_ref   : (1, A)      encoder_att bias (f32)
    # wd_t_ref : (D, A)      decoder_att weight, pre-transposed
    # bd_ref   : (1, A)      decoder_att bias (f32)
    # wf_ref   : (1, A)      full_att weight as a row (f32)
    # bf_ref   : (1,)        full_att bias, SMEM scalar (f32)
    # ctx_ref  : (Bt, E)     context output (f32, lane-dense)
    # alpha_ref: (Bt, N)     attention weights output (f32, lane-dense)
    Bt, N, E = enc_ref.shape
    A = we_t_ref.shape[1]

    enc = enc_ref[...]                                                     # (Bt, N, E)
    dec = dec_ref[...]                                                     # (Bt, D)

    # annotation_vec = encoder_att(encoder_out): one big MXU matmul per tile.
    # Collapsing only the leading (non-lane) dims keeps the layout intact.
    ann = jnp.dot(enc.reshape(Bt * N, E), we_t_ref[...],
                  preferred_element_type=jnp.float32) + be_ref[...]        # (Bt*N, A)
    # hidden_state = decoder_att(decoder_hidden)
    hid = jnp.dot(dec, wd_t_ref[...],
                  preferred_element_type=jnp.float32) + bd_ref[...]        # (Bt, A)

    # tanh(annotation + hidden.unsqueeze(1))  -> EUP
    act = jnp.tanh(ann.reshape(Bt, N, A) + hid[:, None, :])                # (Bt, N, A)

    # full_att: output width 1 -> VPU multiply + lane reduce (keeps layout,
    # avoids a 1-column MXU matmul); scores come out lane-dense as (Bt, N).
    eti = jnp.sum(act * wf_ref[...], axis=-1) + bf_ref[0]                  # (Bt, N)

    # softmax over N (per batch row): lane-axis max/sum, all in f32.
    m = jnp.max(eti, axis=-1, keepdims=True)                               # (Bt, 1)
    e = jnp.exp(eti - m)                                                   # (Bt, N)
    alpha = e * pl.reciprocal(jnp.sum(e, axis=-1, keepdims=True),
                              approx=False)                                # (Bt, N)

    # context_vec = sum_N (encoder_out * alpha), accumulated in f32 (XLU reduce
    # over the sublane axis; lanes stay fully occupied with E).
    ctx = jnp.sum(enc.astype(jnp.float32) * alpha[:, :, None], axis=1)     # (Bt, E)

    ctx_ref[...] = ctx.astype(ctx_ref.dtype)
    alpha_ref[...] = alpha.astype(alpha_ref.dtype)


def _pick_batch_tile(B, N, E, itemsize):
    """Choose a batch tile so Bt*N gives >=256 MXU rows, but the encoder block
    stays <= ~2 MiB (double-buffered it fits every generation's scoped VMEM,
    including v7x's 64 MiB physical VMEM)."""
    rows_target = 256
    bt = max(1, rows_target // max(N, 1))
    block_cap_bytes = 2 * 1024 * 1024
    bt = min(bt, max(1, block_cap_bytes // max(1, N * E * itemsize)))
    if bt >= B:
        return B
    # When tiling below B, keep Bt a multiple of 16 so every (Bt, ...) block is
    # sublane-aligned for both f32 and bf16.
    return max(16, (bt // 16) * 16)


def attention_forward(encoder_out, decoder_hidden, params, *,
                      compute_dtype=None, batch_tile=None):
    B, N, E = encoder_out.shape
    D = decoder_hidden.shape[1]
    A = params["we"].shape[0]

    if compute_dtype is None:
        compute_dtype = encoder_out.dtype
    compute_dtype = jnp.dtype(compute_dtype)

    # --- plain-JAX glue: dtype casts, pre-transposed weights, bias layout ---
    enc = encoder_out.astype(compute_dtype)
    dec = decoder_hidden.astype(compute_dtype)
    we_t = params["we"].T.astype(compute_dtype)            # (E, A)
    wd_t = params["wd"].T.astype(compute_dtype)            # (D, A)
    be = params["be"].reshape(1, A).astype(jnp.float32)
    bd = params["bd"].reshape(1, A).astype(jnp.float32)
    wf = params["wf"].reshape(1, A).astype(jnp.float32)    # full_att weight row
    bf = params["bf"].reshape(1).astype(jnp.float32)       # SMEM scalar

    if batch_tile is None:
        batch_tile = _pick_batch_tile(B, N, E, compute_dtype.itemsize)
    Bt = int(batch_tile)

    # Pad the batch to a multiple of Bt so every grid block is full; padded
    # rows are computed (harmlessly, per-row softmax) and sliced off below.
    Bp = -(-B // Bt) * Bt
    if Bp != B:
        enc = jnp.pad(enc, ((0, Bp - B), (0, 0), (0, 0)))
        dec = jnp.pad(dec, ((0, Bp - B), (0, 0)))
    grid = (Bp // Bt,)

    # Explicit VMEM budget: double-buffered I/O blocks + resident weights +
    # in-kernel f32 intermediates, with headroom; capped at v7x's 64 MiB.
    blk_bytes = (Bt * N * E + Bt * D) * compute_dtype.itemsize + Bt * (E + N) * 4
    w_bytes = (E * A + D * A) * compute_dtype.itemsize + 3 * A * 4
    inter_bytes = 2 * Bt * N * A * 4 + Bt * A * 4
    vmem_limit = int(min(64 << 20,
                         max(8 << 20, 4 * blk_bytes + 2 * w_bytes + 3 * inter_bytes)))

    # Advisory cost hint for XLA's scheduler around the custom call.
    flops = 2 * Bp * N * E * A + 2 * Bp * D * A + 2 * Bp * N * A + 2 * Bp * N * E
    transcendentals = Bp * N * A + Bp * N
    bytes_accessed = (Bp * N * E + Bp * D) * compute_dtype.itemsize \
        + (E * A + D * A) * compute_dtype.itemsize + Bp * (E + N) * 4
    cost = pl.CostEstimate(flops=flops, transcendentals=transcendentals,
                           bytes_accessed=bytes_accessed)

    ctx, alpha = pl.pallas_call(
        _attention_kernel,
        out_shape=(
            jax.ShapeDtypeStruct((Bp, E), jnp.float32),
            jax.ShapeDtypeStruct((Bp, N), jnp.float32),
        ),
        grid=grid,
        in_specs=[
            pl.BlockSpec((Bt, N, E), lambda b: (b, 0, 0)),            # encoder_out tile
            pl.BlockSpec((Bt, D), lambda b: (b, 0)),                  # decoder_hidden tile
            pl.BlockSpec((E, A), lambda b: (0, 0)),                   # W_enc^T (resident)
            pl.BlockSpec((1, A), lambda b: (0, 0)),                   # b_enc
            pl.BlockSpec((D, A), lambda b: (0, 0)),                   # W_dec^T
            pl.BlockSpec((1, A), lambda b: (0, 0)),                   # b_dec
            pl.BlockSpec((1, A), lambda b: (0, 0)),                   # W_full row
            pl.BlockSpec(memory_space=pltpu.MemorySpace.SMEM),        # b_full scalar
        ],
        out_specs=(
            pl.BlockSpec((Bt, E), lambda b: (b, 0)),                  # context (lane-dense)
            pl.BlockSpec((Bt, N), lambda b: (b, 0)),                  # alpha   (lane-dense)
        ),
        compiler_params=pltpu.CompilerParams(
            dimension_semantics=("parallel",),
            vmem_limit_bytes=vmem_limit),
        cost_estimate=cost,
    )(enc, dec, we_t, be, wd_t, bd, wf, bf)

    return ctx[:B], alpha[:B]


def _init_params(key, encoder_dim, decoder_dim, attention_dim):
    """Deterministic init mimicking nn.Linear's default uniform(-1/sqrt(fan_in), ...)."""
    ks = jax.random.split(key, 6)

    def lin(kw, kb, fan_in, fan_out):
        bound = 1.0 / jnp.sqrt(fan_in)
        w = jax.random.uniform(kw, (fan_out, fan_in), jnp.float32, -bound, bound)
        b = jax.random.uniform(kb, (fan_out,), jnp.float32, -bound, bound)
        return w, b

    we, be = lin(ks[0], ks[1], encoder_dim, attention_dim)
    wd, bd = lin(ks[2], ks[3], decoder_dim, attention_dim)
    wf, bf = lin(ks[4], ks[5], attention_dim, 1)
    return {"we": we, "be": be, "wd": wd, "bd": bd, "wf": wf, "bf": bf}


def _reference(encoder_out, decoder_hidden, p):
    ann = encoder_out @ p["we"].T + p["be"]                                  # (B, N, A)
    hid = decoder_hidden @ p["wd"].T + p["bd"]                               # (B, A)
    eti = (jnp.tanh(ann + hid[:, None, :]) @ p["wf"].T + p["bf"])[..., 0]    # (B, N)
    alpha = jax.nn.softmax(eti, axis=1)
    ctx = jnp.sum(encoder_out * alpha[..., None], axis=1)
    return ctx, alpha


if __name__ == "__main__":
    B, N = 2, 8                 # batch, num pixels (sequence of annotation vectors)
    encoder_dim, decoder_dim, attention_dim = 32, 16, 32

    key = jax.random.PRNGKey(0)
    k_enc, k_dec, k_params = jax.random.split(key, 3)
    encoder_out = jax.random.normal(k_enc, (B, N, encoder_dim), jnp.float32)
    decoder_hidden = jax.random.normal(k_dec, (B, decoder_dim), jnp.float32)
    params = _init_params(k_params, encoder_dim, decoder_dim, attention_dim)

    # float32 path: exact vs reference within tight tolerance.
    ctx, alpha = attention_forward(encoder_out, decoder_hidden, params)
    jax.block_until_ready((ctx, alpha))

    ctx_ref, alpha_ref = _reference(encoder_out, decoder_hidden, params)
    assert ctx.shape == (B, encoder_dim) and alpha.shape == (B, N)
    assert jnp.allclose(ctx, ctx_ref, atol=1e-5, rtol=1e-5)
    assert jnp.allclose(alpha, alpha_ref, atol=1e-5, rtol=1e-5)
    assert jnp.allclose(jnp.sum(alpha, axis=1), 1.0, atol=1e-5)

    # bf16 streaming path (halves HBM traffic); softmax/accumulation stay f32.
    ctx_bf, alpha_bf = attention_forward(encoder_out, decoder_hidden, params,
                                         compute_dtype=jnp.bfloat16)
    jax.block_until_ready((ctx_bf, alpha_bf))
    assert jnp.allclose(ctx_bf, ctx_ref, atol=5e-2, rtol=5e-2)
    assert jnp.allclose(alpha_bf, alpha_ref, atol=5e-2, rtol=5e-2)

    print("KERNEL_OK")
</pallas_src>

<mosaic_0001>
module attributes {stable_mosaic.version = 11 : i64} {
  func.func @_attention_kernel(%arg0: i32, %arg1: memref<2x8x32xf32, #tpu.memory_space<vmem>>, %arg2: memref<2x16xf32, #tpu.memory_space<vmem>>, %arg3: memref<32x32xf32, #tpu.memory_space<vmem>>, %arg4: memref<1x32xf32, #tpu.memory_space<vmem>>, %arg5: memref<16x32xf32, #tpu.memory_space<vmem>>, %arg6: memref<1x32xf32, #tpu.memory_space<vmem>>, %arg7: memref<1x32xf32, #tpu.memory_space<vmem>>, %arg8: memref<1xf32, #tpu.memory_space<smem>>, %arg9: memref<2x32xf32, #tpu.memory_space<vmem>>, %arg10: memref<2x8xf32, #tpu.memory_space<vmem>>) attributes {dimension_semantics = [#tpu.dimension_semantics<parallel>], iteration_bounds = array<i64: 1>, scalar_prefetch = 0 : i64, scratch_operands = 0 : i64, tpu.core_type = #tpu.core_type<tc>, window_params = [{transform_indices = @transform_0, window_bounds = array<i64: 2, 8, 32>}, {transform_indices = @transform_1, window_bounds = array<i64: 2, 16>}, {pipeline_mode = #tpu.pipeline_mode<synchronous>, transform_indices = @transform_2, window_bounds = array<i64: 32, 32>}, {pipeline_mode = #tpu.pipeline_mode<synchronous>, transform_indices = @transform_3, window_bounds = array<i64: 1, 32>}, {pipeline_mode = #tpu.pipeline_mode<synchronous>, transform_indices = @transform_4, window_bounds = array<i64: 16, 32>}, {pipeline_mode = #tpu.pipeline_mode<synchronous>, transform_indices = @transform_5, window_bounds = array<i64: 1, 32>}, {pipeline_mode = #tpu.pipeline_mode<synchronous>, transform_indices = @transform_6, window_bounds = array<i64: 1, 32>}, {transform_indices = @transform_7, window_bounds = array<i64: 1>}, {transform_indices = @transform_8, window_bounds = array<i64: 2, 32>}, {transform_indices = @transform_9, window_bounds = array<i64: 2, 8>}]} {
    %c0 = arith.constant 0 : index
    %c0_0 = arith.constant 0 : index
    %c0_1 = arith.constant 0 : index
    %0 = vector.load %arg1[%c0, %c0_0, %c0_1] : memref<2x8x32xf32, #tpu.memory_space<vmem>>, vector<2x8x32xf32>
    %c0_2 = arith.constant 0 : index
    %c0_3 = arith.constant 0 : index
    %1 = vector.load %arg2[%c0_2, %c0_3] : memref<2x16xf32, #tpu.memory_space<vmem>>, vector<2x16xf32>
    %2 = vector.shape_cast %0 : vector<2x8x32xf32> to vector<16x32xf32>
    %c0_4 = arith.constant 0 : index
    %c0_5 = arith.constant 0 : index
    %3 = vector.load %arg3[%c0_4, %c0_5] : memref<32x32xf32, #tpu.memory_space<vmem>>, vector<32x32xf32>
    %cst = arith.constant dense<0.000000e+00> : vector<16x32xf32>
    %4 = tpu.matmul %2, %3, %cst {dimension_numbers = #tpu.dot_dimension_numbers<[1], [0], [0], [1], [0, 0, 1, 1], [], []>} : vector<16x32xf32>, vector<32x32xf32>, vector<16x32xf32> -> vector<16x32xf32>
    %c0_6 = arith.constant 0 : index
    %c0_7 = arith.constant 0 : index
    %5 = vector.load %arg4[%c0_6, %c0_7] : memref<1x32xf32, #tpu.memory_space<vmem>>, vector<1x32xf32>
    %6 = vector.broadcast %5 : vector<1x32xf32> to vector<16x32xf32>
    %7 = arith.addf %4, %6 : vector<16x32xf32>
    %c0_8 = arith.constant 0 : index
    %c0_9 = arith.constant 0 : index
    %8 = vector.load %arg5[%c0_8, %c0_9] : memref<16x32xf32, #tpu.memory_space<vmem>>, vector<16x32xf32>
    %cst_10 = arith.constant dense<0.000000e+00> : vector<2x32xf32>
    %9 = tpu.matmul %1, %8, %cst_10 {dimension_numbers = #tpu.dot_dimension_numbers<[1], [0], [0], [1], [0, 0, 1, 1], [], []>} : vector<2x16xf32>, vector<16x32xf32>, vector<2x32xf32> -> vector<2x32xf32>
    %c0_11 = arith.constant 0 : index
    %c0_12 = arith.constant 0 : index
    %10 = vector.load %arg6[%c0_11, %c0_12] : memref<1x32xf32, #tpu.memory_space<vmem>>, vector<1x32xf32>
    %11 = vector.broadcast %10 : vector<1x32xf32> to vector<2x32xf32>
    %12 = arith.addf %9, %11 : vector<2x32xf32>
    %13 = vector.shape_cast %7 : vector<16x32xf32> to vector<2x8x32xf32>
    %14 = vector.shape_cast %12 : vector<2x32xf32> to vector<2x1x32xf32>
    %15 = vector.broadcast %14 : vector<2x1x32xf32> to vector<2x8x32xf32>
    %16 = arith.addf %13, %15 : vector<2x8x32xf32>
    %17 = math.tanh %16 : vector<2x8x32xf32>
    %c0_13 = arith.constant 0 : index
    %c0_14 = arith.constant 0 : index
    %18 = vector.load %arg7[%c0_13, %c0_14] : memref<1x32xf32, #tpu.memory_space<vmem>>, vector<1x32xf32>
    %19 = vector.shape_cast %18 : vector<1x32xf32> to vector<1x1x32xf32>
    %20 = vector.broadcast %19 : vector<1x1x32xf32> to vector<2x8x32xf32>
    %21 = arith.mulf %17, %20 : vector<2x8x32xf32>
    %cst_15 = arith.constant dense<0.000000e+00> : vector<2x8xf32>
    %22 = vector.multi_reduction <add>, %21, %cst_15 [2] : vector<2x8x32xf32> to vector<2x8xf32>
    %c0_16 = arith.constant 0 : index
    %23 = memref.load %arg8[%c0_16] : memref<1xf32, #tpu.memory_space<smem>>
    %24 = vector.broadcast %23 : f32 to vector<2x8xf32>
    %25 = arith.addf %22, %24 : vector<2x8xf32>
    %cst_17 = arith.constant dense<0xFF800000> : vector<2xf32>
    %26 = vector.multi_reduction <maximumf>, %25, %cst_17 [1] : vector<2x8xf32> to vector<2xf32>
    %27 = vector.shape_cast %26 : vector<2xf32> to vector<2x1xf32>
    %28 = vector.broadcast %27 : vector<2x1xf32> to vector<2x8xf32>
    %29 = arith.subf %25, %28 : vector<2x8xf32>
    %30 = math.exp %29 : vector<2x8xf32>
    %cst_18 = arith.constant dense<0.000000e+00> : vector<2xf32>
    %31 = vector.multi_reduction <add>, %30, %cst_18 [1] : vector<2x8xf32> to vector<2xf32>
    %32 = vector.shape_cast %31 : vector<2xf32> to vector<2x1xf32>
    %33 = tpu.reciprocal %32 : vector<2x1xf32> -> vector<2x1xf32>
    %34 = vector.broadcast %33 : vector<2x1xf32> to vector<2x8xf32>
    %35 = arith.mulf %30, %34 : vector<2x8xf32>
    %36 = vector.shape_cast %35 : vector<2x8xf32> to vector<2x8x1xf32>
    %37 = vector.broadcast %36 : vector<2x8x1xf32> to vector<2x8x32xf32>
    %38 = arith.mulf %0, %37 : vector<2x8x32xf32>
    %cst_19 = arith.constant dense<0.000000e+00> : vector<2x32xf32>
    %39 = vector.multi_reduction <add>, %38, %cst_19 [1] : vector<2x8x32xf32> to vector<2x32xf32>
    %c0_20 = arith.constant 0 : index
    %c0_21 = arith.constant 0 : index
    %40 = vector.load %arg9[%c0_20, %c0_21] : memref<2x32xf32, #tpu.memory_space<vmem>>, vector<2x32xf32>
    tpu.vector_store %arg9[%c0_20, %c0_21], %39 {strides = array<i32>} : memref<2x32xf32, #tpu.memory_space<vmem>>, vector<2x32xf32>,
    %c0_22 = arith.constant 0 : index
    %c0_23 = arith.constant 0 : index
    %41 = vector.load %arg10[%c0_22, %c0_23] : memref<2x8xf32, #tpu.memory_space<vmem>>, vector<2x8xf32>
    tpu.vector_store %arg10[%c0_22, %c0_23], %35 {strides = array<i32>} : memref<2x8xf32, #tpu.memory_space<vmem>>, vector<2x8xf32>,
    return
  }
  func.func @transform_0(%arg0: i32) -> (i32, i32, i32) {
    %c0_i32 = arith.constant 0 : i32
    %c0_i32_0 = arith.constant 0 : i32
    %c0_i32_1 = arith.constant 0 : i32
    return %arg0, %c0_i32, %c0_i32_0 : i32, i32, i32
  }
  func.func @transform_1(%arg0: i32) -> (i32, i32) {
    %c0_i32 = arith.constant 0 : i32
    %c0_i32_0 = arith.constant 0 : i32
    return %arg0, %c0_i32 : i32, i32
  }
  func.func @transform_2(%arg0: i32) -> (i32, i32) {
    %c0_i32 = arith.constant 0 : i32
    %c0_i32_0 = arith.constant 0 : i32
    %c0_i32_1 = arith.constant 0 : i32
    return %c0_i32, %c0_i32_0 : i32, i32
  }
  func.func @transform_3(%arg0: i32) -> (i32, i32) {
    %c0_i32 = arith.constant 0 : i32
    %c0_i32_0 = arith.constant 0 : i32
    %c0_i32_1 = arith.constant 0 : i32
    return %c0_i32, %c0_i32_0 : i32, i32
  }
  func.func @transform_4(%arg0: i32) -> (i32, i32) {
    %c0_i32 = arith.constant 0 : i32
    %c0_i32_0 = arith.constant 0 : i32
    %c0_i32_1 = arith.constant 0 : i32
    return %c0_i32, %c0_i32_0 : i32, i32
  }
  func.func @transform_5(%arg0: i32) -> (i32, i32) {
    %c0_i32 = arith.constant 0 : i32
    %c0_i32_0 = arith.constant 0 : i32
    %c0_i32_1 = arith.constant 0 : i32
    return %c0_i32, %c0_i32_0 : i32, i32
  }
  func.func @transform_6(%arg0: i32) -> (i32, i32) {
    %c0_i32 = arith.constant 0 : i32
    %c0_i32_0 = arith.constant 0 : i32
    %c0_i32_1 = arith.constant 0 : i32
    return %c0_i32, %c0_i32_0 : i32, i32
  }
  func.func @transform_7(%arg0: i32) -> i32 {
    %c0_i32 = arith.constant 0 : i32
    %c0_i32_0 = arith.constant 0 : i32
    return %c0_i32 : i32
  }
  func.func @transform_8(%arg0: i32) -> (i32, i32) {
    %c0_i32 = arith.constant 0 : i32
    %c0_i32_0 = arith.constant 0 : i32
    return %arg0, %c0_i32 : i32, i32
  }
  func.func @transform_9(%arg0: i32) -> (i32, i32) {
    %c0_i32 = arith.constant 0 : i32
    %c0_i32_0 = arith.constant 0 : i32
    return %arg0, %c0_i32 : i32, i32
  }
}

</mosaic_0001>

<llo_original>
// kernel: tpu_custom_call.1
$region0: #{tpu_custom_call.1}
  #allocation0 [shape = 'u32[]', space=smem, size = 0x4, offset = 0x4, fixed_abs, tag = 'smem constant byte address 0x4 - core index']
  #allocation1 [shape = 'u32[144,128]{1,0:T(1,128)}', space=vmem, size = 0x12000, scoped, tag = 'internal scratch']
  #allocation2 [shape = 'f32[1]{0:T(128)S(6)}', space=smem, size = 0x200, scoped, tag = 'scoped memory for tpu_custom_call.1']
  %s0 = inlined_call_operand.hbm [shape: f32[2,8,32], index: 0, kind: input, shape index: {}]
  %s1 = inlined_call_operand.vmem [shape: f32[2,16], index: 1, kind: input, shape index: {}]
  %s2 = inlined_call_operand.hbm [shape: f32[32,32], index: 2, kind: input, shape index: {}]
  %s3 = inlined_call_operand.vmem [shape: f32[1,32], index: 3, kind: input, shape index: {}]
  %s4 = inlined_call_operand.hbm [shape: f32[16,32], index: 4, kind: input, shape index: {}]
  %s5 = inlined_call_operand.vmem [shape: f32[1,32], index: 5, kind: input, shape index: {}]
  %s6 = inlined_call_operand.vmem [shape: f32[1,32], index: 6, kind: input, shape index: {}]
  %s7 = inlined_call_operand.<no memory space> [shape: f32[1], index: 7, kind: input, shape index: {}]
  %s8 = inlined_call_operand.hbm [shape: f32[2,32], index: 8, kind: output, shape index: {0}]
  %s9 = inlined_call_operand.hbm [shape: f32[2,8], index: 9, kind: output, shape index: {1}]
  %10 = xla_tuple %s8, %s9
  %s11 = sld [smem:[#allocation0]]
  $region62: #{tpu_custom_call.1} parent=0
    _
  %s13 = ssub.s32 1, %s11
  %s14 = scalar_select 0, %s13, %s11
  %15 = sst [smem:[#allocation2]] %s7
  $region1: #{tpu_custom_call.1} parent=0
    #allocation3 [shape = 'u8[8192]{0}', space=vmem, size = 0x2000, scoped, tag = 'input window, operand 0, single buffered']
    #allocation4 [shape = 's32[1]{0}', space=sflag, size = 0x4, scoped, tag = 'scoped memory for tpu_custom_call.1']
    #allocation5 [shape = 's32[1]{0}', space=sflag, size = 0x4, scoped, tag = 'scoped memory for tpu_custom_call.1']
    #allocation6 [shape = 'u8[16384]{0}', space=vmem, size = 0x4000, scoped, tag = 'input window, operand 2, single buffered']
    #allocation7 [shape = 's32[1]{0}', space=sflag, size = 0x4, scoped, tag = 'scoped memory for tpu_custom_call.1']
    #allocation8 [shape = 'u8[8192]{0}', space=vmem, size = 0x2000, scoped, tag = 'input window, operand 4, single buffered']
    #allocation9 [shape = 'u8[1024]{0}', space=vmem, size = 0x400, scoped, tag = 'output window, operand 0, single buffered']
    #allocation10 [shape = 'u8[1024]{0}', space=vmem, size = 0x400, scoped, tag = 'output window, operand 1, single buffered']
    #allocation11 [shape = 's32[1]{0}', space=sflag, size = 0x4, scoped, tag = 'scoped memory for tpu_custom_call.1']
    %16 = vsyncpa [#allocation4], 0
    %17 = vsyncpa [#allocation7], 0
    %18 = vsyncpa [#allocation5], 0
    %19 = vsyncpa [#allocation11], 0
    // Predicated region
    $region2: #{tpu_custom_call.1} parent=1 // pred_check
      _
    $region3: #{tpu_custom_call.1} parent=1 // pred_check_branch
      %21 = sbr.rel (0) target = $region5
    $region4: #{tpu_custom_call.1} parent=1 // pred_region
      %s23 = ssub.s32 256, 256
      %24 = vsyncadd [#allocation4], %s23
      %s25 = sshll.u32 [#allocation3], 4
      %s26 = int_to_ptr.vmem [resolvable:$true] %s25
      %31 = dma.hbm_to_vmem [thread:$0]  %s0, 256, %s26, [#allocation4], 128, 128, 8
    $region5: #{tpu_custom_call.1} parent=1 // pred_fallthru
      _
    // Predicated region
    $region6: #{tpu_custom_call.1} parent=1 // pred_check
      _
    $region7: #{tpu_custom_call.1} parent=1 // pred_check_branch
      %33 = sbr.rel (0) target = $region9
    $region8: #{tpu_custom_call.1} parent=1 // pred_region
      _
    $region9: #{tpu_custom_call.1} parent=1 // pred_fallthru
      _
    // Predicated region
    $region10: #{tpu_custom_call.1} parent=1 // pred_check
      _
    $region11: #{tpu_custom_call.1} parent=1 // pred_check_branch
      %35 = sbr.rel (0) target = $region13
    $region12: #{tpu_custom_call.1} parent=1 // pred_region
      %s37 = ssub.s32 512, 512
      %38 = vsyncadd [#allocation7], %s37
      %s39 = sshll.u32 [#allocation6], 4
      %s40 = int_to_ptr.vmem [resolvable:$true] %s39
      %45 = dma.hbm_to_vmem [thread:$0]  %s2, 512, %s40, [#allocation7], 128, 128, 8
    $region13: #{tpu_custom_call.1} parent=1 // pred_fallthru
      _
    // Predicated region
    $region14: #{tpu_custom_call.1} parent=1 // pred_check
      _
    $region15: #{tpu_custom_call.1} parent=1 // pred_check_branch
      %47 = sbr.rel (0) target = $region17
    $region16: #{tpu_custom_call.1} parent=1 // pred_region
      _
    $region17: #{tpu_custom_call.1} parent=1 // pred_fallthru
      _
    // Predicated region
    $region18: #{tpu_custom_call.1} parent=1 // pred_check
      _
    $region19: #{tpu_custom_call.1} parent=1 // pred_check_branch
      %49 = sbr.rel (0) target = $region21
    $region20: #{tpu_custom_call.1} parent=1 // pred_region
      %s51 = ssub.s32 256, 256
      %52 = vsyncadd [#allocation7], %s51
      %s53 = sshll.u32 [#allocation8], 4
      %s54 = int_to_ptr.vmem [resolvable:$true] %s53
      %59 = dma.hbm_to_vmem [thread:$0]  %s4, 256, %s54, [#allocation7], 128, 128, 8
    $region21: #{tpu_custom_call.1} parent=1 // pred_fallthru
      _
    // Predicated region
    $region22: #{tpu_custom_call.1} parent=1 // pred_check
      _
    $region23: #{tpu_custom_call.1} parent=1 // pred_check_branch
      %61 = sbr.rel (0) target = $region25
    $region24: #{tpu_custom_call.1} parent=1 // pred_region
      _
    $region25: #{tpu_custom_call.1} parent=1 // pred_fallthru
      _
    // Predicated region
    $region26: #{tpu_custom_call.1} parent=1 // pred_check
      _
    $region27: #{tpu_custom_call.1} parent=1 // pred_check_branch
      %63 = sbr.rel (0) target = $region29
    $region28: #{tpu_custom_call.1} parent=1 // pred_region
      _
    $region29: #{tpu_custom_call.1} parent=1 // pred_fallthru
      _
    // Predicated region
    $region30: #{tpu_custom_call.1} parent=1 // pred_check
      _
    $region31: #{tpu_custom_call.1} parent=1 // pred_check_branch
      %65 = sbr.rel (0) target = $region33
    $region32: #{tpu_custom_call.1} parent=1 // pred_region
      _
    $region33: #{tpu_custom_call.1} parent=1 // pred_fallthru
      _
    // Predicated region
    $region34: #{tpu_custom_call.1} parent=1 // pred_check
      _
    $region35: #{tpu_custom_call.1} parent=1 // pred_check_branch
      %67 = sbr.rel (0) target = $region37
    $region36: #{tpu_custom_call.1} parent=1 // pred_region
      %68 = dma.done [#allocation4], 256
    $region37: #{tpu_custom_call.1} parent=1 // pred_fallthru
      _
    // Predicated region
    $region38: #{tpu_custom_call.1} parent=1 // pred_check
      _
    $region39: #{tpu_custom_call.1} parent=1 // pred_check_branch
      %70 = sbr.rel (0) target = $region41
    $region40: #{tpu_custom_call.1} parent=1 // pred_region
      %71 = dma.done [#allocation7], 512
    $region41: #{tpu_custom_call.1} parent=1 // pred_fallthru
      _
    // Predicated region
    $region42: #{tpu_custom_call.1} parent=1 // pred_check
      _
    $region43: #{tpu_custom_call.1} parent=1 // pred_check_branch
      %73 = sbr.rel (0) target = $region45
    $region44: #{tpu_custom_call.1} parent=1 // pred_region
      %74 = dma.done [#allocation7], 256
    $region45: #{tpu_custom_call.1} parent=1 // pred_fallthru
      _
    %v75 = vld [vmem:[#allocation3] sm:$0xff]
    %v76 = vld [vmem:[#allocation3 + $0x8] sm:$0xff]
    %v77 = vld [vmem:[%s1] sm:$0x3]
    %v78 = vld [vmem:[#allocation6] sm:$0xff]
    %v79 = vld [vmem:[#allocation6 + $0x8] sm:$0xff]
    %v80 = vld [vmem:[#allocation6 + $0x10] sm:$0xff]
    %v81 = vld [vmem:[#allocation6 + $0x18] sm:$0xff]
    %v82 = vld [vmem:[%s3] sm:$0x1]
    %v84 = vlaneseq
    %v85 = vshrl.u32 %v84, 7
    %v86 = vsub.s32 0, %v85
    %v87 = vrot.slane %v82, %v86
    %vm89 = vcmask 261120
    %v91 = vsel %vm89, %v75, 0
    %v94 = vsel %vm89, %v76, 0
    %96 = vmatprep.subr.mxu0 0.0
    %97 = vmatpush1.msra.mxu0 0.0
    %98 = vmatprep.subr.mxu0 0.0
    %99 = vmatpush1.msra.mxu0 0.0
    %100 = vmatprep.subr.mxu0 0.0
    %101 = vmatpush1.msra.mxu0 0.0
    %102 = vmatprep.subr.mxu0 0.0
    %103 = vmatpush1.msra.mxu0 0.0
    %104 = vmatprep.subr.mxu0 0.0
    %105 = vmatpush1.msra.mxu0 0.0
    %106 = vmatprep.subr.mxu0 0.0
    %107 = vmatpush1.msra.mxu0 0.0
    %108 = vmatprep.subr.mxu0 0.0
    %109 = vmatpush1.msra.mxu0 0.0
    %110 = vmatprep.subr.mxu0 0.0
    %111 = vmatpush1.msra.mxu0 0.0
    %112 = vmatprep.subr.mxu0 0.0
    %113 = vmatpush1.msra.mxu0 0.0
    %114 = vmatprep.subr.mxu0 0.0
    %115 = vmatpush1.msra.mxu0 0.0
    %116 = vmatprep.subr.mxu0 0.0
    %117 = vmatpush1.msra.mxu0 0.0
    %118 = vmatprep.subr.mxu0 0.0
    %119 = vmatpush1.msra.mxu0 0.0
    %120 = vmatprep.subr.mxu0 0.0
    %121 = vmatpush1.msra.mxu0 %v81
    %122 = vmatprep.subr.mxu0 0.0
    %123 = vmatpush1.msra.mxu0 %v80
    %124 = vmatprep.subr.mxu0 0.0
    %125 = vmatpush1.msra.mxu0 %v79
    %126 = vmatprep.subr.mxu0 0.0
    %127 = vmatpush1.msra.mxu0 %v78
    %128 = vmatprep.subr.mxu0 0.0
    %129 = vmatpush2.msra.mxu0 0.0
    %130 = vmatprep.subr.mxu0 0.0
    %131 = vmatpush2.msra.mxu0 0.0
    %132 = vmatprep.subr.mxu0 0.0
    %133 = vmatpush2.msra.mxu0 0.0
    %134 = vmatprep.subr.mxu0 0.0
    %135 = vmatpush2.msra.mxu0 0.0
    %136 = vmatprep.subr.mxu0 0.0
    %137 = vmatpush2.msra.mxu0 0.0
    %138 = vmatprep.subr.mxu0 0.0
    %139 = vmatpush2.msra.mxu0 0.0
    %140 = vmatprep.subr.mxu0 0.0
    %141 = vmatpush2.msra.mxu0 0.0
    %142 = vmatprep.subr.mxu0 0.0
    %143 = vmatpush2.msra.mxu0 0.0
    %144 = vmatprep.subr.mxu0 0.0
    %145 = vmatpush2.msra.mxu0 0.0
    %146 = vmatprep.subr.mxu0 0.0
    %147 = vmatpush2.msra.mxu0 0.0
    %148 = vmatprep.subr.mxu0 0.0
    %149 = vmatpush2.msra.mxu0 0.0
    %150 = vmatprep.subr.mxu0 0.0
    %151 = vmatpush2.msra.mxu0 0.0
    %152 = vmatprep.subr.mxu0 0.0
    %153 = vmatpush2.msra.mxu0 0.0
    %154 = vmatprep.subr.mxu0 0.0
    %155 = vmatpush2.msra.mxu0 0.0
    %156 = vmatprep.subr.mxu0 0.0
    %157 = vmatpush2.msra.mxu0 0.0
    %158 = vmatprep.subr.mxu0 0.0
    %159 = vmatpush2.msra.mxu0 0.0
    %160 = vmatprep.mubr.f32.mxu0 0.0
    %161 = vmatmul.mubr.f32.gmra.mxu0 %v91
    %v162 = vpop.f32.mrf.mxu0
    %v163 = vadd.f32 %v87, %v162
    %v164 = vpop.f32.mrf.mxu0
    %165 = vmatprep.mubr.f32.mxu0 0.0
    %166 = vmatmul.mubr.f32.gmra.mxu0 %v94
    %v167 = vpop.f32.mrf.mxu0
    %v168 = vadd.f32 %v87, %v167
    %v169 = vpop.f32.mrf.mxu0
    %170 = vdwg.mxu0
    %v171 = vld [vmem:[#allocation8] sm:$0xff]
    %v172 = vld [vmem:[#allocation8 + $0x8] sm:$0xff]
    %v173 = vld [vmem:[%s5] sm:$0x1]
    %v175 = vlaneseq
    %v176 = vshrl.u32 %v175, 7
    %v177 = vsub.s32 0, %v176
    %v178 = vrot.slane %v173, %v177
    %vm180 = vcmask 130048
    %v182 = vsel %vm180, %v77, 0
    %184 = vmatprep.subr.mxu0 0.0
    %185 = vmatpush1.msra.mxu0 0.0
    %186 = vmatprep.subr.mxu0 0.0
    %187 = vmatpush1.msra.mxu0 0.0
    %188 = vmatprep.subr.mxu0 0.0
    %189 = vmatpush1.msra.mxu0 0.0
    %190 = vmatprep.subr.mxu0 0.0
    %191 = vmatpush1.msra.mxu0 0.0
    %192 = vmatprep.subr.mxu0 0.0
    %193 = vmatpush1.msra.mxu0 0.0
    %194 = vmatprep.subr.mxu0 0.0
    %195 = vmatpush1.msra.mxu0 0.0
    %196 = vmatprep.subr.mxu0 0.0
    %197 = vmatpush1.msra.mxu0 0.0
    %198 = vmatprep.subr.mxu0 0.0
    %199 = vmatpush1.msra.mxu0 0.0
    %200 = vmatprep.subr.mxu0 0.0
    %201 = vmatpush1.msra.mxu0 0.0
    %202 = vmatprep.subr.mxu0 0.0
    %203 = vmatpush1.msra.mxu0 0.0
    %204 = vmatprep.subr.mxu0 0.0
    %205 = vmatpush1.msra.mxu0 0.0
    %206 = vmatprep.subr.mxu0 0.0
    %207 = vmatpush1.msra.mxu0 0.0
    %208 = vmatprep.subr.mxu0 0.0
    %209 = vmatpush1.msra.mxu0 0.0
    %210 = vmatprep.subr.mxu0 0.0
    %211 = vmatpush1.msra.mxu0 0.0
    %212 = vmatprep.subr.mxu0 0.0
    %213 = vmatpush1.msra.mxu0 %v172
    %214 = vmatprep.subr.mxu0 0.0
    %215 = vmatpush1.msra.mxu0 %v171
    %216 = vmatprep.subr.mxu0 0.0
    %217 = vmatpush2.msra.mxu0 0.0
    %218 = vmatprep.subr.mxu0 0.0
    %219 = vmatpush2.msra.mxu0 0.0
    %220 = vmatprep.subr.mxu0 0.0
    %221 = vmatpush2.msra.mxu0 0.0
    %222 = vmatprep.subr.mxu0 0.0
    %223 = vmatpush2.msra.mxu0 0.0
    %224 = vmatprep.subr.mxu0 0.0
    %225 = vmatpush2.msra.mxu0 0.0
    %226 = vmatprep.subr.mxu0 0.0
    %227 = vmatpush2.msra.mxu0 0.0
    %228 = vmatprep.subr.mxu0 0.0
    %229 = vmatpush2.msra.mxu0 0.0
    %230 = vmatprep.subr.mxu0 0.0
    %231 = vmatpush2.msra.mxu0 0.0
    %232 = vmatprep.subr.mxu0 0.0
    %233 = vmatpush2.msra.mxu0 0.0
    %234 = vmatprep.subr.mxu0 0.0
    %235 = vmatpush2.msra.mxu0 0.0
    %236 = vmatprep.subr.mxu0 0.0
    %237 = vmatpush2.msra.mxu0 0.0
    %238 = vmatprep.subr.mxu0 0.0
    %239 = vmatpush2.msra.mxu0 0.0
    %240 = vmatprep.subr.mxu0 0.0
    %241 = vmatpush2.msra.mxu0 0.0
    %242 = vmatprep.subr.mxu0 0.0
    %243 = vmatpush2.msra.mxu0 0.0
    %244 = vmatprep.subr.mxu0 0.0
    %245 = vmatpush2.msra.mxu0 0.0
    %246 = vmatprep.subr.mxu0 0.0
    %247 = vmatpush2.msra.mxu0 0.0
    %248 = vmatprep.mubr.f32.mxu0 0.0
    %249 = vmatmul.mubr.f32.gmra.mxu0 %v182
    %v250 = vpop.f32.mrf.mxu0
    %v251 = vadd.f32 %v178, %v250
    %v252 = vpop.f32.mrf.mxu0
    %253 = vdwg.mxu0
    %v256 = vunpack.c.l.s4 1966171168
    %v257 = vunpack.c.0.s8 %v256
    %v258 = vlaneseq
    %v259 = vshrl.u32 %v258, 7
    %v260 = vsub.s32 %v257, %v259
    %v261 = vrot.slane %v251, %v260
    %v262 = vcombine.high %v261, %v261
    %v264 = vunpack.c.l.s4 1966171168
    %v265 = vunpack.c.0.s8 %v264
    %v266 = vlaneseq
    %v267 = vshrl.u32 %v266, 7
    %v268 = vsub.s32 %v265, %v267
    %v269 = vrot.slane %v261, %v268
    %v271 = vunpack.c.l.s4 1966171168
    %v272 = vunpack.c.0.s8 %v271
    %v273 = vlaneseq
    %v274 = vshrl.u32 %v273, 7
    %v275 = vsub.s32 %v272, %v274
    %v276 = vrot.slane %v262, %v275
    %v277 = vlaneseq
    %v278 = vshrl.u32 %v277, 7
    %v279 = vsub.s32 0, %v278
    %v280 = vrot.slane %v269, %v279
    %v281 = vlaneseq
    %v282 = vshrl.u32 %v281, 7
    %v283 = vsub.s32 0, %v282
    %v284 = vrot.slane %v276, %v283
    %v287 = vadd.f32 %v163, %v280
    %v288 = vadd.f32 %v168, %v284
    %v289 = vtanh.pop %v287
    %v290 = vtanh.pop %v288
    %v291 = vld [vmem:[%s6] sm:$0x1]
    %v293 = vlaneseq
    %v294 = vshrl.u32 %v293, 7
    %v295 = vsub.s32 0, %v294
    %v296 = vrot.slane %v291, %v295
    %v298 = vmul.f32 %v289, %v296
    %v299 = vmul.f32 %v290, %v296
    %v300 = vsel %vm89, %v298, 0.0
    %301 = vadd.xlane.f32.xlu0 %v300
    %v302 = vpop.xlane.xlu0 %301
    %v303 = vsel %vm89, %v299, 0.0
    %304 = vadd.xlane.f32.xlu0 %v303
    %v305 = vpop.xlane.xlu0 %304
    %s306 = sld [smem:[#allocation2]]
    %v307 = vstv %s306
    %v308 = vadd.f32 %v302, %v307
    %v309 = vadd.f32 %v305, %v307
    %v312 = vlaneseq
    %v313 = vand.u32 %v312, 127
    %v314 = vlaneseq
    %v315 = vshrl.u32 %v314, 7
    %v316 = vsub.s32 %v313, %v315
    %v317 = vrot.slane %v308, %v316
    %v318 = vlaneseq
    %v319 = vshrl.u32 %v318, 7
    %v320 = vsub.s32 %v313, %v319
    %v321 = vrot.slane %v309, %v320
    %vm322 = vcmask 1041409
    %v323 = vsel %vm322, %v321, %v317
    %vm325 = vcmask 58368
    %v326 = vsel %vm325, %v323, -inf
    %327 = vmax.xlane.f32.xlu0 %v326
    %v328 = vpop.xlane.xlu0 %327
    %v330 = vlaneseq
    %v331 = vshrl.u32 %v330, 7
    %v332 = vsub.s32 0, %v331
    %v333 = vrot.slane %v328, %v332
    %v334 = vlaneseq
    %v335 = vshrl.u32 %v334, 7
    %v336 = vsub.s32 1, %v335
    %v337 = vrot.slane %v328, %v336
    %v340 = vsub.f32 %v308, %v333
    %v341 = vsub.f32 %v309, %v337
    %v342 = vmul.f32 %v340, 1.442695
    %v343 = vpow.pop %v342
    %v344 = vmul.f32 %v341, 1.442695
    %v345 = vpow.pop %v344
    %348 = vset.pattern.permute.xlu0 0
    %349 = vperm.xlu0 %348, %v343
    %v350 = vpop.permute.xlu0 %349
    %351 = vset.pattern.permute.xlu0 0
    %352 = vperm.xlu0 %351, %v345
    %v353 = vpop.permute.xlu0 %352
    %v354 = vlaneseq
    %v355 = vshrl.u32 %v354, 7
    %v356 = vsub.s32 %v313, %v355
    %v357 = vrot.slane %v350, %v356
    %v358 = vlaneseq
    %v359 = vshrl.u32 %v358, 7
    %v360 = vsub.s32 %v313, %v359
    %v361 = vrot.slane %v353, %v360
    %v362 = vsel %vm322, %v361, %v357
    %v364 = vsel %vm325, %v362, 0.0
    %365 = vadd.xlane.f32.xlu0 %v364
    %v366 = vpop.xlane.xlu0 %365
    %v367 = vrcp.pop %v366
    %v369 = vlaneseq
    %v370 = vshrl.u32 %v369, 7
    %v371 = vsub.s32 0, %v370
    %v372 = vrot.slane %v367, %v371
    %v373 = vlaneseq
    %v374 = vshrl.u32 %v373, 7
    %v375 = vsub.s32 1, %v374
    %v376 = vrot.slane %v367, %v375
    %v379 = vmul.f32 %v343, %v372
    %v380 = vmul.f32 %v345, %v376
    %382 = vset.pattern.permute.xlu0 0
    %383 = vperm.xlu0 %382, %v379
    %v384 = vpop.permute.xlu0 %383
    %387 = vset.pattern.permute.xlu0 0
    %388 = vperm.xlu0 %387, %v380
    %v389 = vpop.permute.xlu0 %388
    %v391 = vmul.f32 %v75, %v384
    %v392 = vmul.f32 %v76, %v389
    %v393 = vsel %vm89, %v391, 0.0
    %v394 = vrot.slane %v393, 4
    %v395 = vadd.f32 %v393, %v394
    %v396 = vrot.slane %v395, 2
    %v397 = vadd.f32 %v395, %v396
    %v398 = vrot.slane %v397, 1
    %v399 = vadd.f32 %v397, %v398
    %v400 = vsel %vm89, %v392, 0.0
    %v401 = vrot.slane %v400, 4
    %v402 = vadd.f32 %v400, %v401
    %v403 = vrot.slane %v402, 2
    %v404 = vadd.f32 %v402, %v403
    %v405 = vrot.slane %v404, 1
    %v406 = vadd.f32 %v404, %v405
    %v409 = vsel %vm322, %v406, %v399
    %vm411 = vcmask 254976
    %412 = vst.msk [vmem:[#allocation9] sm:$0x3] %vm411, %v409
    %v413 = vlaneseq
    %v414 = vshrl.u32 %v413, 7
    %v415 = vsub.s32 %v313, %v414
    %v416 = vrot.slane %v384, %v415
    %v417 = vlaneseq
    %v418 = vshrl.u32 %v417, 7
    %v419 = vsub.s32 %v313, %v418
    %v420 = vrot.slane %v389, %v419
    %v421 = vsel %vm322, %v420, %v416
    %423 = vst.msk [vmem:[#allocation10] sm:$0x3] %vm325, %v421
    // Predicated region
    $region46: #{tpu_custom_call.1} parent=1 // pred_check
      _
    $region47: #{tpu_custom_call.1} parent=1 // pred_check_branch
      %425 = sbr.rel (0) target = $region49
    $region48: #{tpu_custom_call.1} parent=1 // pred_region
      %s427 = ssub.s32 32, 32
      %428 = vsyncadd [#allocation5], %s427
      %s430 = sshll.u32 [#allocation9], 4
      %s431 = int_to_ptr.vmem [resolvable:$true] %s430
      %433 = dma.vmem_to_hbm [thread:$0]  %s431, 32, %s8, [#allocation5]
    $region49: #{tpu_custom_call.1} parent=1 // pred_fallthru
      _
    // Predicated region
    $region50: #{tpu_custom_call.1} parent=1 // pred_check
      _
    $region51: #{tpu_custom_call.1} parent=1 // pred_check_branch
      %435 = sbr.rel (0) target = $region53
    $region52: #{tpu_custom_call.1} parent=1 // pred_region
      %s437 = ssub.s32 32, 32
      %438 = vsyncadd [#allocation11], %s437
      %s440 = sshll.u32 [#allocation10], 4
      %s441 = int_to_ptr.vmem [resolvable:$true] %s440
      %443 = dma.vmem_to_hbm [thread:$0]  %s441, 32, %s9, [#allocation11]
    $region53: #{tpu_custom_call.1} parent=1 // pred_fallthru
      _
    // Predicated region
    $region54: #{tpu_custom_call.1} parent=1 // pred_check
      _
    $region55: #{tpu_custom_call.1} parent=1 // pred_check_branch
      %445 = sbr.rel (0) target = $region57
    $region56: #{tpu_custom_call.1} parent=1 // pred_region
      %446 = dma.done [#allocation5], 32
    $region57: #{tpu_custom_call.1} parent=1 // pred_fallthru
      _
    // Predicated region
    $region58: #{tpu_custom_call.1} parent=1 // pred_check
      _
    $region59: #{tpu_custom_call.1} parent=1 // pred_check_branch
      %448 = sbr.rel (0) target = $region61
    $region60: #{tpu_custom_call.1} parent=1 // pred_region
      %449 = dma.done [#allocation11], 32
    $region61: #{tpu_custom_call.1} parent=1 // pred_fallthru
      _
    %450 = vsyncpa [#allocation4], 1
    %451 = vsyncpa [#allocation7], 1
    %452 = vsyncpa [#allocation5], 1
    %453 = vsyncpa [#allocation11], 1

</llo_original>
